<compile_context>
chip_gen: v5e
topology: v5e:2x2
jax: 0.10.0
libtpu: 0.0.40
codegen_flags: <defaults>
</compile_context>

<pallas_src>
import functools

import jax
import jax.numpy as jnp
from jax.experimental import pallas as pl
from jax.experimental.pallas import tpu as pltpu


def _mlp_kernel(x_ref, w1_ref, b1_ref, w2_ref, b2_ref, o_ref):
    # Layer 1: (TB, 132) @ (132, 20) + (1, 20) -> relu   (f32 MXU accumulation)
    h = jnp.dot(x_ref[...], w1_ref[...], preferred_element_type=jnp.float32)
    h = jnp.maximum(h + b1_ref[...], 0.0)
    # Layer 2: (TB, 20) @ (20, 8) + (1, 8) -> relu   (cols 6..7 are zero pad)
    y = jnp.dot(h, w2_ref[...], preferred_element_type=jnp.float32)
    y = jnp.maximum(y + b2_ref[...], 0.0)
    o_ref[...] = y.astype(o_ref.dtype)


def _round_up(x, m):
    return (x + m - 1) // m * m


def net_forward(x, w1, b1, w2, b2, *, tb=4096):
    """x: (B, 132) f32; w1: (132, 20); b1: (1, 20); w2: (20, 6); b2: (1, 6)."""
    B, f_in = x.shape
    f_hid = w1.shape[1]
    f_out = w2.shape[1]
    f_out_p = _round_up(f_out, 8)            # 6 -> 8 output lanes

    # Batch tile: multiple of 8 (sublane rule), at most `tb`; if the batch is
    # big enough, cap at ~B/2 so the parallel grid axis has >= 2 steps (v7x
    # megacore sharding).
    TB = min(int(tb), _round_up(B, 8))
    TB = max(8, (TB // 8) * 8)
    if B >= 16:
        TB = min(TB, _round_up(pl.cdiv(B, 2), 8))
    n_blocks = pl.cdiv(B, TB)

    # Only the tiny layer-2 weight/bias are padded; x stays unpadded.
    w2_p = jnp.zeros((f_hid, f_out_p), w2.dtype).at[:, :f_out].set(w2)
    b2_p = jnp.zeros((1, f_out_p), b2.dtype).at[:, :f_out].set(b2)

    # Weights/biases: full-extent block, constant index -> VMEM-resident.
    const = lambda a: pl.BlockSpec(a.shape, lambda i: (0,) * a.ndim)

    flops = 2 * B * (f_in * f_hid + f_hid * f_out_p)
    bytes_accessed = 4 * (
        B * (f_in + f_out_p)                  # x in, out
        + f_in * f_hid + f_hid * f_out_p      # weights
        + f_hid + f_out_p                     # biases
    )

    out_p = pl.pallas_call(
        _mlp_kernel,
        out_shape=jax.ShapeDtypeStruct((B, f_out_p), jnp.float32),
        grid=(n_blocks,),
        in_specs=[
            pl.BlockSpec((TB, f_in), lambda i: (i, 0)),   # 132 == full last dim
            const(w1),
            const(b1),
            const(w2_p),
            const(b2_p),
        ],
        out_specs=pl.BlockSpec((TB, f_out_p), lambda i: (i, 0)),
        compiler_params=pltpu.CompilerParams(
            dimension_semantics=("parallel",),    # megacore on v7x
            vmem_limit_bytes=32 * 1024 * 1024,    # > v5e's 16 MiB default
        ),
        cost_estimate=pl.CostEstimate(
            flops=flops, transcendentals=0, bytes_accessed=bytes_accessed
        ),
    )(x, w1, b1, w2_p, b2_p)

    # Strip the 6->8 output lane padding.
    return out_p[:, :f_out]


def init_params(key):
    """Deterministic init matching nn.Linear's default (uniform +/- 1/sqrt(fan_in))."""
    k1, k2, k3, k4 = jax.random.split(key, 4)
    lim1 = 1.0 / jnp.sqrt(132.0)
    lim2 = 1.0 / jnp.sqrt(20.0)
    w1 = jax.random.uniform(k1, (132, 20), jnp.float32, -lim1, lim1)
    b1 = jax.random.uniform(k2, (1, 20), jnp.float32, -lim1, lim1)
    w2 = jax.random.uniform(k3, (20, 6), jnp.float32, -lim2, lim2)
    b2 = jax.random.uniform(k4, (1, 6), jnp.float32, -lim2, lim2)
    return w1, b1, w2, b2


def _ref(x, w1, b1, w2, b2):
    return jnp.maximum(jnp.maximum(x @ w1 + b1, 0.0) @ w2 + b2, 0.0)


if __name__ == "__main__":
    key = jax.random.PRNGKey(0)
    kx, kx2, kp = jax.random.split(key, 3)
    w1, b1, w2, b2 = init_params(kp)

    # Small demo batch (single grid step).
    batch = 8
    x = jax.random.normal(kx, (batch, 132), jnp.float32)
    fwd = jax.jit(net_forward)
    out = fwd(x, w1, b1, w2, b2)
    jax.block_until_ready(out)
    assert out.shape == (batch, 6)
    assert jnp.allclose(out, _ref(x, w1, b1, w2, b2), atol=1e-5, rtol=1e-5)

    # Larger, non-tile-aligned batch with a non-multiple-of-8 caller tb:
    # exercises TB rounding, >=2 grid steps, and partial-block edge clipping.
    batch2 = 200
    x2 = jax.random.normal(kx2, (batch2, 132), jnp.float32)
    fwd2 = jax.jit(functools.partial(net_forward, tb=100))
    out2 = fwd2(x2, w1, b1, w2, b2)
    jax.block_until_ready(out2)
    assert out2.shape == (batch2, 6)
    assert jnp.allclose(out2, _ref(x2, w1, b1, w2, b2), atol=1e-5, rtol=1e-5)

    print("KERNEL_OK")
</pallas_src>

<mosaic_0001>
module attributes {stable_mosaic.version = 11 : i64} {
  func.func @_mlp_kernel(%arg0: i32, %arg1: memref<8x132xf32, #tpu.memory_space<vmem>>, %arg2: memref<132x20xf32, #tpu.memory_space<vmem>>, %arg3: memref<1x20xf32, #tpu.memory_space<vmem>>, %arg4: memref<20x8xf32, #tpu.memory_space<vmem>>, %arg5: memref<1x8xf32, #tpu.memory_space<vmem>>, %arg6: memref<8x8xf32, #tpu.memory_space<vmem>>) attributes {dimension_semantics = [#tpu.dimension_semantics<parallel>], iteration_bounds = array<i64: 1>, scalar_prefetch = 0 : i64, scratch_operands = 0 : i64, tpu.core_type = #tpu.core_type<tc>, window_params = [{transform_indices = @transform_0, window_bounds = array<i64: 8, 132>}, {pipeline_mode = #tpu.pipeline_mode<synchronous>, transform_indices = @transform_1, window_bounds = array<i64: 132, 20>}, {pipeline_mode = #tpu.pipeline_mode<synchronous>, transform_indices = @transform_2, window_bounds = array<i64: 1, 20>}, {pipeline_mode = #tpu.pipeline_mode<synchronous>, transform_indices = @transform_3, window_bounds = array<i64: 20, 8>}, {pipeline_mode = #tpu.pipeline_mode<synchronous>, transform_indices = @transform_4, window_bounds = array<i64: 1, 8>}, {transform_indices = @transform_5, window_bounds = array<i64: 8, 8>}]} {
    %c0 = arith.constant 0 : index
    %c0_0 = arith.constant 0 : index
    %0 = vector.load %arg1[%c0, %c0_0] : memref<8x132xf32, #tpu.memory_space<vmem>>, vector<8x132xf32>
    %c0_1 = arith.constant 0 : index
    %c0_2 = arith.constant 0 : index
    %1 = vector.load %arg2[%c0_1, %c0_2] : memref<132x20xf32, #tpu.memory_space<vmem>>, vector<132x20xf32>
    %cst = arith.constant dense<0.000000e+00> : vector<8x20xf32>
    %2 = tpu.matmul %0, %1, %cst {dimension_numbers = #tpu.dot_dimension_numbers<[1], [0], [0], [1], [0, 0, 1, 1], [], []>} : vector<8x132xf32>, vector<132x20xf32>, vector<8x20xf32> -> vector<8x20xf32>
    %c0_3 = arith.constant 0 : index
    %c0_4 = arith.constant 0 : index
    %3 = vector.load %arg3[%c0_3, %c0_4] : memref<1x20xf32, #tpu.memory_space<vmem>>, vector<1x20xf32>
    %4 = vector.broadcast %3 : vector<1x20xf32> to vector<8x20xf32>
    %5 = arith.addf %2, %4 : vector<8x20xf32>
    %cst_5 = arith.constant 0.000000e+00 : f32
    %6 = vector.broadcast %cst_5 : f32 to vector<8x20xf32>
    %7 = arith.maximumf %5, %6 : vector<8x20xf32>
    %c0_6 = arith.constant 0 : index
    %c0_7 = arith.constant 0 : index
    %8 = vector.load %arg4[%c0_6, %c0_7] : memref<20x8xf32, #tpu.memory_space<vmem>>, vector<20x8xf32>
    %cst_8 = arith.constant dense<0.000000e+00> : vector<8x8xf32>
    %9 = tpu.matmul %7, %8, %cst_8 {dimension_numbers = #tpu.dot_dimension_numbers<[1], [0], [0], [1], [0, 0, 1, 1], [], []>} : vector<8x20xf32>, vector<20x8xf32>, vector<8x8xf32> -> vector<8x8xf32>
    %c0_9 = arith.constant 0 : index
    %c0_10 = arith.constant 0 : index
    %10 = vector.load %arg5[%c0_9, %c0_10] : memref<1x8xf32, #tpu.memory_space<vmem>>, vector<1x8xf32>
    %11 = vector.broadcast %10 : vector<1x8xf32> to vector<8x8xf32>
    %12 = arith.addf %9, %11 : vector<8x8xf32>
    %cst_11 = arith.constant 0.000000e+00 : f32
    %13 = vector.broadcast %cst_11 : f32 to vector<8x8xf32>
    %14 = arith.maximumf %12, %13 : vector<8x8xf32>
    %c0_12 = arith.constant 0 : index
    %c0_13 = arith.constant 0 : index
    %15 = vector.load %arg6[%c0_12, %c0_13] : memref<8x8xf32, #tpu.memory_space<vmem>>, vector<8x8xf32>
    tpu.vector_store %arg6[%c0_12, %c0_13], %14 {strides = array<i32>} : memref<8x8xf32, #tpu.memory_space<vmem>>, vector<8x8xf32>,
    return
  }
  func.func @transform_0(%arg0: i32) -> (i32, i32) {
    %c0_i32 = arith.constant 0 : i32
    %c0_i32_0 = arith.constant 0 : i32
    return %arg0, %c0_i32 : i32, i32
  }
  func.func @transform_1(%arg0: i32) -> (i32, i32) {
    %c0_i32 = arith.constant 0 : i32
    %c0_i32_0 = arith.constant 0 : i32
    %c0_i32_1 = arith.constant 0 : i32
    return %c0_i32, %c0_i32_0 : i32, i32
  }
  func.func @transform_2(%arg0: i32) -> (i32, i32) {
    %c0_i32 = arith.constant 0 : i32
    %c0_i32_0 = arith.constant 0 : i32
    %c0_i32_1 = arith.constant 0 : i32
    return %c0_i32, %c0_i32_0 : i32, i32
  }
  func.func @transform_3(%arg0: i32) -> (i32, i32) {
    %c0_i32 = arith.constant 0 : i32
    %c0_i32_0 = arith.constant 0 : i32
    %c0_i32_1 = arith.constant 0 : i32
    return %c0_i32, %c0_i32_0 : i32, i32
  }
  func.func @transform_4(%arg0: i32) -> (i32, i32) {
    %c0_i32 = arith.constant 0 : i32
    %c0_i32_0 = arith.constant 0 : i32
    %c0_i32_1 = arith.constant 0 : i32
    return %c0_i32, %c0_i32_0 : i32, i32
  }
  func.func @transform_5(%arg0: i32) -> (i32, i32) {
    %c0_i32 = arith.constant 0 : i32
    %c0_i32_0 = arith.constant 0 : i32
    return %arg0, %c0_i32 : i32, i32
  }
}

</mosaic_0001>

<llo_original>
// kernel: net_forward.1
$region0: #{net_forward.1}
  #allocation0 [shape = 'u32[]', space=smem, size = 0x4, offset = 0x4, fixed_abs, tag = 'smem constant byte address 0x4 - core index']
  #allocation1 [shape = 'u32[72,128]{1,0:T(1,128)}', space=vmem, size = 0x9000, scoped, tag = 'internal scratch']
  %s0 = inlined_call_operand.vmem [shape: f32[8,132], index: 0, kind: input, shape index: {}]
  %s1 = inlined_call_operand.vmem [shape: f32[132,20], index: 1, kind: input, shape index: {}]
  %s2 = inlined_call_operand.vmem [shape: f32[1,20], index: 2, kind: input, shape index: {}]
  %s3 = inlined_call_operand.vmem [shape: f32[20,8], index: 3, kind: input, shape index: {}]
  %s4 = inlined_call_operand.vmem [shape: f32[1,8], index: 4, kind: input, shape index: {}]
  %s5 = inlined_call_operand.hbm [shape: f32[8,8], index: 5, kind: output, shape index: {}]
  %s6 = sld [smem:[#allocation0]]
  $region30: #{net_forward.1} parent=0
    _
  %s8 = ssub.s32 1, %s6
  %s9 = scalar_select 0, %s8, %s6
  $region1: #{net_forward.1} parent=0
    #allocation2 [shape = 'u8[4096]{0}', space=vmem, size = 0x1000, scoped, tag = 'output window, operand 0, single buffered']
    #allocation3 [shape = 's32[1]{0}', space=sflag, size = 0x4, scoped, tag = 'scoped memory for net_forward.1']
    %10 = vsyncpa [#allocation3], 0
    // Predicated region
    $region2: #{net_forward.1} parent=1 // pred_check
      _
    $region3: #{net_forward.1} parent=1 // pred_check_branch
      %12 = sbr.rel (0) target = $region5
    $region4: #{net_forward.1} parent=1 // pred_region
      _
    $region5: #{net_forward.1} parent=1 // pred_fallthru
      _
    // Predicated region
    $region6: #{net_forward.1} parent=1 // pred_check
      _
    $region7: #{net_forward.1} parent=1 // pred_check_branch
      %14 = sbr.rel (0) target = $region9
    $region8: #{net_forward.1} parent=1 // pred_region
      _
    $region9: #{net_forward.1} parent=1 // pred_fallthru
      _
    // Predicated region
    $region10: #{net_forward.1} parent=1 // pred_check
      _
    $region11: #{net_forward.1} parent=1 // pred_check_branch
      %16 = sbr.rel (0) target = $region13
    $region12: #{net_forward.1} parent=1 // pred_region
      _
    $region13: #{net_forward.1} parent=1 // pred_fallthru
      _
    // Predicated region
    $region14: #{net_forward.1} parent=1 // pred_check
      _
    $region15: #{net_forward.1} parent=1 // pred_check_branch
      %18 = sbr.rel (0) target = $region17
    $region16: #{net_forward.1} parent=1 // pred_region
      _
    $region17: #{net_forward.1} parent=1 // pred_fallthru
      _
    // Predicated region
    $region18: #{net_forward.1} parent=1 // pred_check
      _
    $region19: #{net_forward.1} parent=1 // pred_check_branch
      %20 = sbr.rel (0) target = $region21
    $region20: #{net_forward.1} parent=1 // pred_region
      _
    $region21: #{net_forward.1} parent=1 // pred_fallthru
      _
    %v21 = vld [vmem:[%s0] sm:$0xff]
    %v22 = vld [vmem:[%s0 + $0x8] sm:$0xff]
    %v23 = vld [vmem:[%s1] sm:$0xff]
    %v24 = vld [vmem:[%s1 + $0x8] sm:$0xff]
    %v25 = vld [vmem:[%s1 + $0x10] sm:$0xff]
    %v26 = vld [vmem:[%s1 + $0x18] sm:$0xff]
    %v27 = vld [vmem:[%s1 + $0x20] sm:$0xff]
    %v28 = vld [vmem:[%s1 + $0x28] sm:$0xff]
    %v29 = vld [vmem:[%s1 + $0x30] sm:$0xff]
    %v30 = vld [vmem:[%s1 + $0x38] sm:$0xff]
    %v31 = vld [vmem:[%s1 + $0x40] sm:$0xff]
    %v32 = vld [vmem:[%s1 + $0x48] sm:$0xff]
    %v33 = vld [vmem:[%s1 + $0x50] sm:$0xff]
    %v34 = vld [vmem:[%s1 + $0x58] sm:$0xff]
    %v35 = vld [vmem:[%s1 + $0x60] sm:$0xff]
    %v36 = vld [vmem:[%s1 + $0x68] sm:$0xff]
    %v37 = vld [vmem:[%s1 + $0x70] sm:$0xff]
    %v38 = vld [vmem:[%s1 + $0x78] sm:$0xff]
    %v39 = vld [vmem:[%s1 + $0x80] sm:$0xf]
    %v40 = vld [vmem:[%s2] sm:$0x1]
    %v42 = vperm.slane %v40, 0
    %vm44 = vcmask 31744
    %v46 = vsel %vm44, %v22, 0
    %vm48 = vcmask 1043456
    %v50 = vsel %vm48, %v39, 0
    %52 = vmatpush.msra.mxu0 %v38
    %53 = vmatpush.msra.mxu0 %v37
    %54 = vmatpush.msra.mxu0 %v36
    %55 = vmatpush.msra.mxu0 %v35
    %56 = vmatpush.msra.mxu0 %v34
    %57 = vmatpush.msra.mxu0 %v33
    %58 = vmatpush.msra.mxu0 %v32
    %59 = vmatpush.msra.mxu0 %v31
    %60 = vmatpush.msra.mxu0 %v30
    %61 = vmatpush.msra.mxu0 %v29
    %62 = vmatpush.msra.mxu0 %v28
    %63 = vmatpush.msra.mxu0 %v27
    %64 = vmatpush.msra.mxu0 %v26
    %65 = vmatpush.msra.mxu0 %v25
    %66 = vmatpush.msra.mxu0 %v24
    %67 = vmatpush.msra.mxu0 %v23
    %68 = vmatmul.f32.gmra.mxu0 %v21
    %v69 = vpop.f32.mrf.mxu0
    %v70 = vadd.f32 %v42, %v69
    %71 = vdwg.mxu0
    %72 = vmatpush.msra.mxu0 0.0
    %73 = vmatpush.msra.mxu0 0.0
    %74 = vmatpush.msra.mxu0 0.0
    %75 = vmatpush.msra.mxu0 0.0
    %76 = vmatpush.msra.mxu0 0.0
    %77 = vmatpush.msra.mxu0 0.0
    %78 = vmatpush.msra.mxu0 0.0
    %79 = vmatpush.msra.mxu0 0.0
    %80 = vmatpush.msra.mxu0 0.0
    %81 = vmatpush.msra.mxu0 0.0
    %82 = vmatpush.msra.mxu0 0.0
    %83 = vmatpush.msra.mxu0 0.0
    %84 = vmatpush.msra.mxu0 0.0
    %85 = vmatpush.msra.mxu0 0.0
    %86 = vmatpush.msra.mxu0 0.0
    %87 = vmatpush.msra.mxu0 %v50
    %88 = vmatmul.f32.gmra.mxu0 %v46
    %v89 = vpop.f32.mrf.mxu0
    %v90 = vadd.f32 %v70, %v89
    %91 = vdwg.mxu0
    %v92 = vmax.f32 %v90, 0.0
    %v93 = vld [vmem:[%s3] sm:$0xff]
    %v94 = vld [vmem:[%s3 + $0x8] sm:$0xff]
    %v95 = vld [vmem:[%s3 + $0x10] sm:$0xf]
    %v96 = vld [vmem:[%s4] sm:$0x1]
    %v98 = vperm.slane %v96, 0
    %vm100 = vcmask 162816
    %v102 = vsel %vm100, %v92, 0
    %v105 = vsel %vm48, %v95, 0
    %107 = vmatpush.msra.mxu0 0.0
    %108 = vmatpush.msra.mxu0 0.0
    %109 = vmatpush.msra.mxu0 0.0
    %110 = vmatpush.msra.mxu0 0.0
    %111 = vmatpush.msra.mxu0 0.0
    %112 = vmatpush.msra.mxu0 0.0
    %113 = vmatpush.msra.mxu0 0.0
    %114 = vmatpush.msra.mxu0 0.0
    %115 = vmatpush.msra.mxu0 0.0
    %116 = vmatpush.msra.mxu0 0.0
    %117 = vmatpush.msra.mxu0 0.0
    %118 = vmatpush.msra.mxu0 0.0
    %119 = vmatpush.msra.mxu0 0.0
    %120 = vmatpush.msra.mxu0 %v105
    %121 = vmatpush.msra.mxu0 %v94
    %122 = vmatpush.msra.mxu0 %v93
    %123 = vmatmul.f32.gmra.mxu0 %v102
    %v124 = vpop.f32.mrf.mxu0
    %v125 = vadd.f32 %v98, %v124
    %126 = vdwg.mxu0
    %v127 = vmax.f32 %v125, 0.0
    %vm128 = vcmask 64512
    %129 = vst.msk [vmem:[#allocation2] sm:$0xff] %vm128, %v127
    // Predicated region
    $region22: #{net_forward.1} parent=1 // pred_check
      _
    $region23: #{net_forward.1} parent=1 // pred_check_branch
      %131 = sbr.rel (0) target = $region25
    $region24: #{net_forward.1} parent=1 // pred_region
      %133 = vsyncadd [#allocation3], 0
      %s135 = sshll.u32 [#allocation2], 4
      %s136 = int_to_ptr.vmem [resolvable:$true] %s135
      %s137 = sshll.u32 %s5, 4
      %s138 = int_to_ptr.hbm [resolvable:$true] %s137
      %140 = dma.vmem_to_hbm [thread:$0]  %s136, 128, %s138, [#allocation3]
    $region25: #{net_forward.1} parent=1 // pred_fallthru
      _
    // Predicated region
    $region26: #{net_forward.1} parent=1 // pred_check
      _
    $region27: #{net_forward.1} parent=1 // pred_check_branch
      %142 = sbr.rel (0) target = $region29
    $region28: #{net_forward.1} parent=1 // pred_region
      %144 = dma.done [#allocation3], 128
    $region29: #{net_forward.1} parent=1 // pred_fallthru
      _
    %145 = vsyncpa [#allocation3], 1

</llo_original>
